<compile_context>
chip_gen: v7x
topology: tpu7x:2x2x1
jax: 0.10.0
libtpu: 0.0.40
codegen_flags: <defaults>
</compile_context>

<pallas_src>
import jax
import jax.numpy as jnp
from jax.experimental import pallas as pl
from jax.experimental.pallas import tpu as pltpu

IN_FEATURES = 20
OUT_FEATURES = 10
SINGLE_TILE_MAX_B = 256   # below this, a single grid-less tile (no pipeline machinery)
MAX_BLOCK_B = 4096        # large sublane-aligned tiles amortize per-grid-step overhead


def prepare_params(weight, bias, extra_bias):
    """One-time (outside the hot path) parameter preparation.

    weight: (OUT, IN)        -> wt: (IN, OUT)   pre-transposed
    bias: (OUT,), extra_bias -> fb: (1, OUT)    bias - extra_bias (scalar folded in)
    """
    wt = weight.T
    fb = (bias - extra_bias).reshape(1, -1)
    return wt, fb


def _linear_sub_relu_kernel(x_ref, wt_ref, fb_ref, o_ref):
    # x_ref:  (TB, IN)   VMEM
    # wt_ref: (IN, OUT)  VMEM  (pre-transposed weight, VMEM-resident across grid)
    # fb_ref: (1, OUT)   VMEM  (bias - extra_bias)
    # o_ref:  (TB, OUT)  VMEM  (narrow: only the 10 real output columns)
    acc = jnp.dot(x_ref[...], wt_ref[...], preferred_element_type=jnp.float32)
    o_ref[...] = jnp.maximum(acc + fb_ref[...], 0.0).astype(o_ref.dtype)


def _round_up(v, m):
    return (v + m - 1) // m * m


def linear_sub_relu(x, wt, fb, *, block_b=None):
    """x: (B, IN) f32; wt/fb from prepare_params. Returns (B, OUT)."""
    B, in_f = x.shape
    out_f = wt.shape[1]

    if B <= SINGLE_TILE_MAX_B:
        # Tiny/moderate batch: single grid-less call over whole-array VMEM
        # blocks (no pipeline / double-buffer machinery).
        return pl.pallas_call(
            _linear_sub_relu_kernel,
            out_shape=jax.ShapeDtypeStruct((B, out_f), x.dtype),
            in_specs=[
                pl.BlockSpec(memory_space=pltpu.MemorySpace.VMEM),
                pl.BlockSpec(memory_space=pltpu.MemorySpace.VMEM),
                pl.BlockSpec(memory_space=pltpu.MemorySpace.VMEM),
            ],
            out_specs=pl.BlockSpec(memory_space=pltpu.MemorySpace.VMEM),
        )(x, wt, fb)

    if block_b is None:
        # At least 2 tiles (keeps both v7x TensorCores busy for moderate B),
        # capped at MAX_BLOCK_B, sublane-aligned.
        block_b = min(MAX_BLOCK_B, _round_up(pl.cdiv(B, 2), 8))
    block_b = max(8, _round_up(block_b, 8))

    nb = pl.cdiv(B, block_b)
    # out_shape is exactly (B, out_f): the ragged last block's out-of-range
    # stores are discarded, so no host-side pad of x or slice of y is needed.
    return pl.pallas_call(
        _linear_sub_relu_kernel,
        out_shape=jax.ShapeDtypeStruct((B, out_f), x.dtype),
        grid=(nb,),
        in_specs=[
            pl.BlockSpec((block_b, in_f), lambda i: (i, 0)),
            pl.BlockSpec((in_f, out_f), lambda i: (0, 0)),   # VMEM-resident
            pl.BlockSpec((1, out_f), lambda i: (0, 0)),       # VMEM-resident
        ],
        out_specs=pl.BlockSpec((block_b, out_f), lambda i: (i, 0)),
        compiler_params=pltpu.CompilerParams(
            # batch tiles are independent -> shard across v7x's 2 TensorCores
            dimension_semantics=("parallel",),
        ),
    )(x, wt, fb)


if __name__ == "__main__":
    key = jax.random.PRNGKey(0)
    k_x, k_w, k_b, k_e, k_xb = jax.random.split(key, 5)

    # Module-consistent shapes: x1 = (1, 20), Linear(20, 10), scalar extra bias.
    x1 = jax.random.normal(k_x, (1, IN_FEATURES), dtype=jnp.float32)
    bound = 1.0 / jnp.sqrt(IN_FEATURES)
    weight = jax.random.uniform(k_w, (OUT_FEATURES, IN_FEATURES),
                                minval=-bound, maxval=bound, dtype=jnp.float32)
    bias = jax.random.uniform(k_b, (OUT_FEATURES,), minval=-bound, maxval=bound,
                              dtype=jnp.float32)
    extra_bias = jax.random.normal(k_e, (1,), dtype=jnp.float32)

    # One-time parameter prep (transpose + scalar-bias fusion), outside hot path.
    wt, fb = prepare_params(weight, bias, extra_bias)

    def ref_fn(x):
        return jnp.maximum(x @ weight.T + bias - extra_bias, 0.0)

    # 1) Original module shape (B=1): grid-less single-tile path.
    out1 = jax.block_until_ready(linear_sub_relu(x1, wt, fb))
    assert out1.shape == (1, OUT_FEATURES)
    assert jnp.allclose(out1, ref_fn(x1), atol=1e-5), "B=1 mismatch vs reference"

    # 2) Batched path: exercises the gridded, parallel kernel including a
    #    ragged final block (640 rows, block_b=256 -> 3 blocks, last is ragged).
    xb = jax.random.normal(k_xb, (640, IN_FEATURES), dtype=jnp.float32)
    outb = jax.block_until_ready(linear_sub_relu(xb, wt, fb, block_b=256))
    assert outb.shape == (640, OUT_FEATURES)
    assert jnp.allclose(outb, ref_fn(xb), atol=1e-4), "batched mismatch vs reference"

    # 3) Default block_b selection (2 tiles for moderate B).
    outd = jax.block_until_ready(linear_sub_relu(xb, wt, fb))
    assert outd.shape == (640, OUT_FEATURES)
    assert jnp.allclose(outd, ref_fn(xb), atol=1e-4), "default-tile mismatch vs reference"

    print("KERNEL_OK")
</pallas_src>

<mosaic_0001>
module attributes {stable_mosaic.version = 11 : i64} {
  func.func @_linear_sub_relu_kernel(%arg0: memref<1x20xf32, #tpu.memory_space<vmem>>, %arg1: memref<20x10xf32, #tpu.memory_space<vmem>>, %arg2: memref<1x10xf32, #tpu.memory_space<vmem>>, %arg3: memref<1x10xf32, #tpu.memory_space<vmem>>) attributes {dimension_semantics = [], scalar_prefetch = 0 : i64, scratch_operands = 0 : i64, tpu.core_type = #tpu.core_type<tc>} {
    %c0 = arith.constant 0 : index
    %c0_0 = arith.constant 0 : index
    %0 = vector.load %arg0[%c0, %c0_0] : memref<1x20xf32, #tpu.memory_space<vmem>>, vector<1x20xf32>
    %c0_1 = arith.constant 0 : index
    %c0_2 = arith.constant 0 : index
    %1 = vector.load %arg1[%c0_1, %c0_2] : memref<20x10xf32, #tpu.memory_space<vmem>>, vector<20x10xf32>
    %cst = arith.constant dense<0.000000e+00> : vector<1x10xf32>
    %2 = tpu.matmul %0, %1, %cst {dimension_numbers = #tpu.dot_dimension_numbers<[1], [0], [0], [1], [0, 0, 1, 1], [], []>} : vector<1x20xf32>, vector<20x10xf32>, vector<1x10xf32> -> vector<1x10xf32>
    %c0_3 = arith.constant 0 : index
    %c0_4 = arith.constant 0 : index
    %3 = vector.load %arg2[%c0_3, %c0_4] : memref<1x10xf32, #tpu.memory_space<vmem>>, vector<1x10xf32>
    %4 = arith.addf %2, %3 : vector<1x10xf32>
    %cst_5 = arith.constant 0.000000e+00 : f32
    %5 = vector.broadcast %cst_5 : f32 to vector<1x10xf32>
    %6 = arith.maximumf %4, %5 : vector<1x10xf32>
    %c0_6 = arith.constant 0 : index
    %c0_7 = arith.constant 0 : index
    %7 = vector.load %arg3[%c0_6, %c0_7] : memref<1x10xf32, #tpu.memory_space<vmem>>, vector<1x10xf32>
    tpu.vector_store %arg3[%c0_6, %c0_7], %6 {strides = array<i32>} : memref<1x10xf32, #tpu.memory_space<vmem>>, vector<1x10xf32>,
    return
  }
}

</mosaic_0001>

<llo_original>
// kernel: tpu_custom_call.1
$region0: #{tpu_custom_call.1}
  #allocation0 [shape = 'u32[]', space=smem, size = 0x4, offset = 0x4, fixed_abs, tag = 'smem constant byte address 0x4 - core index']
  #allocation1 [shape = 'u32[144,128]{1,0:T(1,128)}', space=vmem, size = 0x12000, scoped, tag = 'internal scratch']
  %s0 = inlined_call_operand.vmem [shape: f32[1,20], index: 0, kind: input, shape index: {}]
  %s1 = inlined_call_operand.vmem [shape: f32[20,10], index: 1, kind: input, shape index: {}]
  %s2 = inlined_call_operand.vmem [shape: f32[1,10], index: 2, kind: input, shape index: {}]
  %s3 = inlined_call_operand.hbm [shape: f32[1,10], index: 3, kind: output, shape index: {}]
  %s4 = sld [smem:[#allocation0]]
  $region22: #{tpu_custom_call.1} parent=0
    _
  %s6 = ssub.s32 1, %s4
  %s7 = scalar_select 0, %s6, %s4
  $region1: #{tpu_custom_call.1} parent=0
    #allocation2 [shape = 'u8[512]{0}', space=vmem, size = 0x400, scoped, tag = 'output window, operand 0, single buffered']
    #allocation3 [shape = 's32[1]{0}', space=sflag, size = 0x4, scoped, tag = 'scoped memory for tpu_custom_call.1']
    %8 = vsyncpa [#allocation3], 0
    // Predicated region
    $region2: #{tpu_custom_call.1} parent=1 // pred_check
      _
    $region3: #{tpu_custom_call.1} parent=1 // pred_check_branch
      %10 = sbr.rel (0) target = $region5
    $region4: #{tpu_custom_call.1} parent=1 // pred_region
      _
    $region5: #{tpu_custom_call.1} parent=1 // pred_fallthru
      _
    // Predicated region
    $region6: #{tpu_custom_call.1} parent=1 // pred_check
      _
    $region7: #{tpu_custom_call.1} parent=1 // pred_check_branch
      %12 = sbr.rel (0) target = $region9
    $region8: #{tpu_custom_call.1} parent=1 // pred_region
      _
    $region9: #{tpu_custom_call.1} parent=1 // pred_fallthru
      _
    // Predicated region
    $region10: #{tpu_custom_call.1} parent=1 // pred_check
      _
    $region11: #{tpu_custom_call.1} parent=1 // pred_check_branch
      %14 = sbr.rel (0) target = $region13
    $region12: #{tpu_custom_call.1} parent=1 // pred_region
      _
    $region13: #{tpu_custom_call.1} parent=1 // pred_fallthru
      _
    %v15 = vld [vmem:[%s0] sm:$0x1]
    %v16 = vld [vmem:[%s1] sm:$0xff]
    %v17 = vld [vmem:[%s1 + $0x8] sm:$0xff]
    %v18 = vld [vmem:[%s1 + $0x10] sm:$0xf]
    %v19 = vld [vmem:[%s2] sm:$0x1]
    %vm20 = vcmask 162816
    %v22 = vsel %vm20, %v15, 0
    %vm24 = vcmask 1043456
    %v26 = vsel %vm24, %v18, 0
    %28 = vmatprep.subr.mxu0 0.0
    %29 = vmatpush1.msra.mxu0 %v16
    %30 = vmatprep.subr.mxu0 0.0
    %31 = vmatpush1.msra.mxu0 %v17
    %32 = vmatprep.subr.mxu0 0.0
    %33 = vmatpush1.msra.mxu0 %v26
    %34 = vmatprep.subr.mxu0 0.0
    %35 = vmatpush1.msra.mxu0 0.0
    %36 = vmatprep.subr.mxu0 0.0
    %37 = vmatpush1.msra.mxu0 0.0
    %38 = vmatprep.subr.mxu0 0.0
    %39 = vmatpush1.msra.mxu0 0.0
    %40 = vmatprep.subr.mxu0 0.0
    %41 = vmatpush1.msra.mxu0 0.0
    %42 = vmatprep.subr.mxu0 0.0
    %43 = vmatpush1.msra.mxu0 0.0
    %44 = vmatprep.subr.mxu0 0.0
    %45 = vmatpush1.msra.mxu0 0.0
    %46 = vmatprep.subr.mxu0 0.0
    %47 = vmatpush1.msra.mxu0 0.0
    %48 = vmatprep.subr.mxu0 0.0
    %49 = vmatpush1.msra.mxu0 0.0
    %50 = vmatprep.subr.mxu0 0.0
    %51 = vmatpush1.msra.mxu0 0.0
    %52 = vmatprep.subr.mxu0 0.0
    %53 = vmatpush1.msra.mxu0 0.0
    %54 = vmatprep.subr.mxu0 0.0
    %55 = vmatpush1.msra.mxu0 0.0
    %56 = vmatprep.subr.mxu0 0.0
    %57 = vmatpush1.msra.mxu0 0.0
    %58 = vmatprep.subr.mxu0 0.0
    %59 = vmatpush1.msra.mxu0 0.0
    %60 = vmatprep.subr.mxu0 0.0
    %61 = vmatpush1.msra.mxu0 0.0
    %62 = vmatprep.subr.mxu0 0.0
    %63 = vmatpush1.msra.mxu0 0.0
    %64 = vmatprep.subr.mxu0 0.0
    %65 = vmatpush1.msra.mxu0 0.0
    %66 = vmatprep.subr.mxu0 0.0
    %67 = vmatpush1.msra.mxu0 0.0
    %68 = vmatprep.subr.mxu0 0.0
    %69 = vmatpush1.msra.mxu0 0.0
    %70 = vmatprep.subr.mxu0 0.0
    %71 = vmatpush1.msra.mxu0 0.0
    %72 = vmatprep.subr.mxu0 0.0
    %73 = vmatpush1.msra.mxu0 0.0
    %74 = vmatprep.subr.mxu0 0.0
    %75 = vmatpush1.msra.mxu0 0.0
    %76 = vmatprep.subr.mxu0 0.0
    %77 = vmatpush1.msra.mxu0 0.0
    %78 = vmatprep.subr.mxu0 0.0
    %79 = vmatpush1.msra.mxu0 0.0
    %80 = vmatprep.subr.mxu0 0.0
    %81 = vmatpush1.msra.mxu0 0.0
    %82 = vmatprep.subr.mxu0 0.0
    %83 = vmatpush1.msra.mxu0 0.0
    %84 = vmatprep.subr.mxu0 0.0
    %85 = vmatpush1.msra.mxu0 0.0
    %86 = vmatprep.subr.mxu0 0.0
    %87 = vmatpush1.msra.mxu0 0.0
    %88 = vmatprep.subr.mxu0 0.0
    %89 = vmatpush1.msra.mxu0 0.0
    %90 = vmatprep.subr.mxu0 0.0
    %91 = vmatpush1.msra.mxu0 0.0
    %92 = vmatprep.mubr.f32.mxu0 0.0
    %93 = vmatmul.mubr.f32.gmra.mrb[0].mxu0 %v22
    %v94 = vpop.f32.mrb[0].mxu0
    %v95 = vadd.f32 %v19, %v94
    %v96 = vpop.f32.mrb[0].mxu0
    %97 = vdwg.mxu0
    %v98 = vmax.f32 %v95, 0.0
    %vm99 = vcmask 73728
    %100 = vst.msk [vmem:[#allocation2] sm:$0x1] %vm99, %v98
    // Predicated region
    $region14: #{tpu_custom_call.1} parent=1 // pred_check
      _
    $region15: #{tpu_custom_call.1} parent=1 // pred_check_branch
      %102 = sbr.rel (0) target = $region17
    $region16: #{tpu_custom_call.1} parent=1 // pred_region
      %s104 = ssub.s32 16, 16
      %105 = vsyncadd [#allocation3], %s104
      %s107 = sshll.u32 [#allocation2], 4
      %s108 = int_to_ptr.vmem [resolvable:$true] %s107
      %110 = dma.vmem_to_hbm [thread:$0]  %s108, 16, %s3, [#allocation3]
    $region17: #{tpu_custom_call.1} parent=1 // pred_fallthru
      _
    // Predicated region
    $region18: #{tpu_custom_call.1} parent=1 // pred_check
      _
    $region19: #{tpu_custom_call.1} parent=1 // pred_check_branch
      %112 = sbr.rel (0) target = $region21
    $region20: #{tpu_custom_call.1} parent=1 // pred_region
      %113 = dma.done [#allocation3], 16
    $region21: #{tpu_custom_call.1} parent=1 // pred_fallthru
      _
    %114 = vsyncpa [#allocation3], 1

</llo_original>
